<compile_context>
chip_gen: v6e
topology: v6e:2x2x1
jax: 0.10.0
libtpu: 0.0.40
codegen_flags: <defaults>
</compile_context>

<pallas_src>
import functools

import numpy as np

import jax
import jax.numpy as jnp
from jax.experimental import pallas as pl
from jax.experimental.pallas import tpu as pltpu


def _round_up(x, m):
    return ((x + m - 1) // m) * m


def _traj_embed_kernel(x_ref, w_ref, out_ref, *, pack, c, vp, k_pad):
    """x_ref: (T, pack*(c+1)) merged [obs rows | global token ids] (f32).
    w_ref: (k_pad, pack*D) fused weight.  out_ref: (T, pack*D)."""
    x = x_ref[...]
    t = x.shape[0]
    pc = pack * c

    obs = x[:, :pc]                                  # (T, pack*c)
    gtok = x[:, pc:pc + pack].astype(jnp.int32)      # (T, pack): slot*vp + tok

    m = jnp.isinf(obs)                               # fill positions
    obs_z = jnp.where(m, 0.0, obs)                   # masked_fill(obs, 0)
    mask_f = m.astype(jnp.float32)                   # drives the -b rows

    # One broadcasted iota builds the one-hots for ALL pack slots at once:
    # lane j of the group belongs to slot j // vp, vocab id j % vp, and the
    # host already offset each token by slot*vp (slots never overlap).
    iota = jax.lax.broadcasted_iota(jnp.int32, (t, pack * vp), 1)
    oh = (iota == gtok[:, 0:1]).astype(jnp.float32)
    for k in range(1, pack):
        oh = oh + (iota == gtok[:, k:k + 1]).astype(jnp.float32)

    parts = [obs_z, mask_f, oh]
    pad = k_pad - (2 * pc + pack * vp)
    if pad:
        parts.append(jnp.zeros((t, pad), jnp.float32))
    feat = jnp.concatenate(parts, axis=1)            # (T, k_pad), type-grouped

    # Single fused MXU matmul: coord Linear + bias + second masked_fill + emb.
    out_ref[...] = jnp.dot(
        feat, w_ref[...], preferred_element_type=jnp.float32
    ).astype(out_ref.dtype)


def trajectory_embedding(obs, all_tokens, w, b, emb_table, *,
                         row_tile=2048, out_dtype=jnp.float32):
    """obs: (B,S,C) f32, all_tokens: (B,S) int, w: (C,D), b: (D,), emb: (V,D)."""
    B, S, C = obs.shape
    D = w.shape[1]
    V = emb_table.shape[0]
    N = B * S

    # Lane-packing factor: stored output row is pack*D = 128 lanes wide.
    pack = 128 // D if (D <= 128 and 128 % D == 0) else 1
    # TODO(synk): if D does not divide 128 (pack == 1, D < 128) stores fall
    # back to masked partial vst's; still correct, just slower.
    vp = _round_up(max(V, 1), 8)          # per-slot one-hot width
    pc = pack * C
    k_raw = 2 * pc + pack * vp            # [obs | mask | one-hot] feature width
    k_pad = _round_up(k_raw, 8)           # keep MXU K sublane-aligned

    # --- fused weight: [W ; -b on x-mask rows ; (emb + b) one-hot rows] -----
    w32 = w.astype(jnp.float32)
    b32 = b.reshape(-1).astype(jnp.float32)
    emb_b = emb_table.astype(jnp.float32) + b32[None, :]
    w_fused = jnp.zeros((k_pad, pack * D), jnp.float32)
    for k in range(pack):
        cs = k * D
        w_fused = w_fused.at[k * C:(k + 1) * C, cs:cs + D].set(w32)
        w_fused = w_fused.at[pc + k * C, cs:cs + D].set(-b32)          # x-mask row
        w_fused = w_fused.at[2 * pc + k * vp:2 * pc + k * vp + V,
                             cs:cs + D].set(emb_b)

    # --- tile / grid sizing --------------------------------------------------
    np_raw = (N + pack - 1) // pack
    np_ceil8 = _round_up(np_raw, 8)
    row_tile = max(8, (row_tile // 8) * 8)
    tile = min(row_tile, np_ceil8)
    if np_ceil8 >= 16:                      # keep >=2 grid steps for v7x megacore
        tile = min(tile, _round_up(np_ceil8 // 2, 8))
    np_pad = _round_up(np_raw, tile)
    n_pad = np_pad * pack

    # --- host packing: one merged lane-dense input stream --------------------
    obs_f = obs.reshape(N, C).astype(jnp.float32)
    tok_f = jnp.clip(all_tokens.reshape(N).astype(jnp.int32), 0, V - 1)
    if n_pad != N:
        # Padding rows are flagged as fill (inf) -> output emb[0]; sliced off.
        obs_f = jnp.concatenate(
            [obs_f, jnp.full((n_pad - N, C), jnp.inf, jnp.float32)], axis=0)
        tok_f = jnp.concatenate(
            [tok_f, jnp.zeros((n_pad - N,), jnp.int32)], axis=0)
    obs_p = obs_f.reshape(np_pad, pc)
    gtok = (tok_f.reshape(np_pad, pack)
            + (jnp.arange(pack, dtype=jnp.int32) * vp)[None, :]
            ).astype(jnp.float32)                         # exact: ids << 2^24
    x_packed = jnp.concatenate([obs_p, gtok], axis=1)     # (np_pad, pack*(C+1))

    # --- VMEM budget / cost hints --------------------------------------------
    lane = 128
    out_itemsize = np.dtype(out_dtype).itemsize
    in_tile_b = tile * max(lane, _round_up(pack * (C + 1), lane)) * 4
    out_tile_b = tile * max(lane, _round_up(pack * D, lane)) * out_itemsize
    w_b = _round_up(k_pad, 8) * max(lane, _round_up(pack * D, lane)) * 4
    vmem_bytes = 2 * (in_tile_b + out_tile_b + w_b) + (4 << 20)

    cost = pl.CostEstimate(
        flops=2 * np_pad * k_pad * pack * D,
        transcendentals=0,
        bytes_accessed=int(x_packed.size * 4
                           + np_pad * pack * D * out_itemsize
                           + w_fused.size * 4))

    kernel = functools.partial(_traj_embed_kernel,
                               pack=pack, c=C, vp=vp, k_pad=k_pad)

    out = pl.pallas_call(
        kernel,
        out_shape=jax.ShapeDtypeStruct((np_pad, pack * D), out_dtype),
        grid_spec=pltpu.PrefetchScalarGridSpec(
            num_scalar_prefetch=0,
            grid=(np_pad // tile,),
            in_specs=[
                pl.BlockSpec((tile, pack * (C + 1)), lambda i: (i, 0)),  # merged rows
                pl.BlockSpec((k_pad, pack * D), lambda i: (0, 0)),       # fused weight
            ],
            out_specs=pl.BlockSpec((tile, pack * D), lambda i: (i, 0)),
        ),
        compiler_params=pltpu.CompilerParams(
            dimension_semantics=("parallel",),
            vmem_limit_bytes=int(vmem_bytes)),
        cost_estimate=cost,
    )(x_packed, w_fused)

    # Free row-major reshapes back to (B, S, D).
    return out.reshape(n_pad, D)[:N].reshape(B, S, D)


def _reference(obs, all_tokens, w, b, emb_table):
    mask = jnp.isinf(obs)[:, :, 0]
    obs_z = jnp.where(mask[:, :, None], 0.0, obs)
    coord = jnp.einsum("bsc,cd->bsd", obs_z, w) + b
    coord = jnp.where(mask[:, :, None], 0.0, coord)
    tok_emb = emb_table[all_tokens]
    return coord + tok_emb


if __name__ == "__main__":
    # Shapes consistent with the module: coord_dims=2, dim=32, small vocab.
    B, S, C, D, V = 2, 128, 2, 32, 5

    key = jax.random.PRNGKey(0)
    k_obs, k_tok, k_w, k_b, k_emb = jax.random.split(key, 5)

    obs = jax.random.normal(k_obs, (B, S, C), dtype=jnp.float32)
    # Fill positions (inf on both coordinates, as the module requires).
    obs = obs.at[0, 2, :].set(jnp.inf)
    obs = obs.at[1, 5, :].set(jnp.inf)
    obs = obs.at[1, 100, :].set(jnp.inf)

    all_tokens = jax.random.randint(k_tok, (B, S), 0, V, dtype=jnp.int32)

    # Deterministic synthetic parameters (no checkpoint loading).
    w = jax.random.normal(k_w, (C, D), dtype=jnp.float32) * 0.1
    b = jax.random.normal(k_b, (D,), dtype=jnp.float32) * 0.1
    emb_table = jax.random.normal(k_emb, (V, D), dtype=jnp.float32) * 0.1

    out = trajectory_embedding(obs, all_tokens, w, b, emb_table)
    out = jax.block_until_ready(out)

    ref = _reference(obs, all_tokens, w, b, emb_table)
    assert out.shape == (B, S, D)
    assert bool(jnp.all(jnp.isfinite(out)))
    assert bool(jnp.allclose(out, ref, atol=1e-5, rtol=1e-5))

    print("KERNEL_OK")
</pallas_src>

<mosaic_0001>
module attributes {stable_mosaic.version = 11 : i64} {
  func.func @_traj_embed_kernel(%arg0: i32, %arg1: memref<32x12xf32, #tpu.memory_space<vmem>>, %arg2: memref<48x128xf32, #tpu.memory_space<vmem>>, %arg3: memref<32x128xf32, #tpu.memory_space<vmem>>) attributes {dimension_semantics = [#tpu.dimension_semantics<parallel>], iteration_bounds = array<i64: 2>, scalar_prefetch = 0 : i64, scratch_operands = 0 : i64, tpu.core_type = #tpu.core_type<tc>, window_params = [{transform_indices = @transform_0, window_bounds = array<i64: 32, 12>}, {pipeline_mode = #tpu.pipeline_mode<synchronous>, transform_indices = @transform_1, window_bounds = array<i64: 48, 128>}, {transform_indices = @transform_2, window_bounds = array<i64: 32, 128>}]} {
    %c0 = arith.constant 0 : index
    %c0_0 = arith.constant 0 : index
    %0 = vector.load %arg1[%c0, %c0_0] : memref<32x12xf32, #tpu.memory_space<vmem>>, vector<32x12xf32>
    %1 = vector.extract_strided_slice %0 {offsets = [0, 0], sizes = [32, 8], strides = [1, 1]} : vector<32x12xf32> to vector<32x8xf32>
    %2 = vector.extract_strided_slice %0 {offsets = [0, 8], sizes = [32, 4], strides = [1, 1]} : vector<32x12xf32> to vector<32x4xf32>
    %3 = arith.fptosi %2 : vector<32x4xf32> to vector<32x4xi32>
    %4 = math.absf %1 : vector<32x8xf32>
    %cst = arith.constant 0x7F800000 : f32
    %5 = vector.broadcast %cst : f32 to vector<32x8xf32>
    %6 = arith.cmpf oeq, %4, %5 : vector<32x8xf32>
    %cst_1 = arith.constant 0.000000e+00 : f32
    %7 = vector.broadcast %cst_1 : f32 to vector<32x8xf32>
    %8 = arith.select %6, %7, %1 : vector<32x8xi1>, vector<32x8xf32>
    %9 = arith.extui %6 : vector<32x8xi1> to vector<32x8xi32>
    %10 = arith.sitofp %9 : vector<32x8xi32> to vector<32x8xf32>
    %11 = tpu.iota {dimensions = array<i32: 1>} : vector<32x32xi32>
    %12 = vector.extract_strided_slice %3 {offsets = [0, 0], sizes = [32, 1], strides = [1, 1]} : vector<32x4xi32> to vector<32x1xi32>
    %13 = vector.broadcast %12 : vector<32x1xi32> to vector<32x32xi32>
    %14 = arith.cmpi eq, %11, %13 : vector<32x32xi32>
    %15 = arith.extui %14 : vector<32x32xi1> to vector<32x32xi32>
    %16 = arith.sitofp %15 : vector<32x32xi32> to vector<32x32xf32>
    %17 = vector.extract_strided_slice %3 {offsets = [0, 1], sizes = [32, 1], strides = [1, 1]} : vector<32x4xi32> to vector<32x1xi32>
    %18 = vector.broadcast %17 : vector<32x1xi32> to vector<32x32xi32>
    %19 = arith.cmpi eq, %11, %18 : vector<32x32xi32>
    %20 = arith.extui %19 : vector<32x32xi1> to vector<32x32xi32>
    %21 = arith.sitofp %20 : vector<32x32xi32> to vector<32x32xf32>
    %22 = arith.addf %16, %21 : vector<32x32xf32>
    %23 = vector.extract_strided_slice %3 {offsets = [0, 2], sizes = [32, 1], strides = [1, 1]} : vector<32x4xi32> to vector<32x1xi32>
    %24 = vector.broadcast %23 : vector<32x1xi32> to vector<32x32xi32>
    %25 = arith.cmpi eq, %11, %24 : vector<32x32xi32>
    %26 = arith.extui %25 : vector<32x32xi1> to vector<32x32xi32>
    %27 = arith.sitofp %26 : vector<32x32xi32> to vector<32x32xf32>
    %28 = arith.addf %22, %27 : vector<32x32xf32>
    %29 = vector.extract_strided_slice %3 {offsets = [0, 3], sizes = [32, 1], strides = [1, 1]} : vector<32x4xi32> to vector<32x1xi32>
    %30 = vector.broadcast %29 : vector<32x1xi32> to vector<32x32xi32>
    %31 = arith.cmpi eq, %11, %30 : vector<32x32xi32>
    %32 = arith.extui %31 : vector<32x32xi1> to vector<32x32xi32>
    %33 = arith.sitofp %32 : vector<32x32xi32> to vector<32x32xf32>
    %34 = arith.addf %28, %33 : vector<32x32xf32>
    %35 = tpu.concatenate %8, %10, %34 in 1 : vector<32x8xf32>, vector<32x8xf32>, vector<32x32xf32> -> vector<32x48xf32>
    %c0_2 = arith.constant 0 : index
    %c0_3 = arith.constant 0 : index
    %36 = vector.load %arg2[%c0_2, %c0_3] : memref<48x128xf32, #tpu.memory_space<vmem>>, vector<48x128xf32>
    %cst_4 = arith.constant dense<0.000000e+00> : vector<32x128xf32>
    %37 = tpu.matmul %35, %36, %cst_4 {dimension_numbers = #tpu.dot_dimension_numbers<[1], [0], [0], [1], [0, 0, 1, 1], [], []>} : vector<32x48xf32>, vector<48x128xf32>, vector<32x128xf32> -> vector<32x128xf32>
    %c0_5 = arith.constant 0 : index
    %c0_6 = arith.constant 0 : index
    %38 = vector.load %arg3[%c0_5, %c0_6] : memref<32x128xf32, #tpu.memory_space<vmem>>, vector<32x128xf32>
    tpu.vector_store %arg3[%c0_5, %c0_6], %37 {strides = array<i32>} : memref<32x128xf32, #tpu.memory_space<vmem>>, vector<32x128xf32>,
    return
  }
  func.func @transform_0(%arg0: i32) -> (i32, i32) {
    %c0_i32 = arith.constant 0 : i32
    %c0_i32_0 = arith.constant 0 : i32
    return %arg0, %c0_i32 : i32, i32
  }
  func.func @transform_1(%arg0: i32) -> (i32, i32) {
    %c0_i32 = arith.constant 0 : i32
    %c0_i32_0 = arith.constant 0 : i32
    %c0_i32_1 = arith.constant 0 : i32
    return %c0_i32, %c0_i32_0 : i32, i32
  }
  func.func @transform_2(%arg0: i32) -> (i32, i32) {
    %c0_i32 = arith.constant 0 : i32
    %c0_i32_0 = arith.constant 0 : i32
    return %arg0, %c0_i32 : i32, i32
  }
}

</mosaic_0001>

<llo_original>
// kernel: tpu_custom_call.1
$region0: #{tpu_custom_call.1}
  #allocation0 [shape = 'u32[]', space=smem, size = 0x4, offset = 0x4, fixed_abs, tag = 'smem constant byte address 0x4 - core index']
  #allocation1 [shape = 'u32[144,128]{1,0:T(1,128)}', space=vmem, size = 0x12000, scoped, tag = 'internal scratch']
  %s0 = inlined_call_operand.vmem [shape: f32[64,12], index: 0, kind: input, shape index: {}]
  %s1 = inlined_call_operand.vmem [shape: f32[48,128], index: 1, kind: input, shape index: {}]
  %s2 = inlined_call_operand.hbm [shape: f32[64,128], index: 2, kind: output, shape index: {}]
  %s3 = sld [smem:[#allocation0]]
  $region41: #{tpu_custom_call.1} parent=0
    _
  %s5 = ssub.s32 1, %s3
  %s6 = scalar_select 0, %s5, %s3
  $region1: #{tpu_custom_call.1} parent=0
    #allocation2 [shape = 'u8[32768]{0}', space=vmem, size = 0x8000, scoped, tag = 'output window, operand 0']
    #allocation3 [shape = 's32[2]{0}', space=sflag, size = 0x8, scoped, tag = 'scoped memory for tpu_custom_call.1']
    %7 = vsyncpa [#allocation3], 0
    %s8 = scalar_lea.sflag [#allocation3], 1
    %9 = vsyncpa %s8, 0
    loop: start=0, step=1, limit=4
    $region2: #{tpu_custom_call.1} parent=1 // loop_pre_header
      _
    $region3: #{tpu_custom_call.1} parent=1 // loop_header
      %s11 = sphi 0, %s15
      %p12 = scmp.ge.s32.totalorder %s11, 4
      %s21 = sphi 0, %s23
      %s24 = sphi 0, %s21
      %s25 = sphi 0, %s24
      %s41 = sphi 0, %s25
      %s45 = sphi 0, %s45
      %s47 = sphi 0, %s45
      %s48 = sphi 0, %s47
      %s62 = sphi 0, %s48
      %s68 = sphi 0, %s70
      %s71 = sphi 0, %s68
      %s72 = sphi 0, %s71
      %s88 = sphi 0, %s72
    $region4: #{tpu_custom_call.1} parent=1 // loop_header_branch
      %14 = sbr.rel (%p12) target = $region8
    $region5: #{tpu_custom_call.1} parent=1 // loop_body
      %s16 = ssub.s32 %s11, 1
      %s17 = ssub.s32 %s11, 2
      %s18 = sadd.s32 %s11, 1
      %s19 = ssub.s32 %s11, %s18
      %p20 = scmp.eq.s32.totalorder %s19, 0
      %s22 = sadd.s32 %s21, 1
      %s23 = scalar_select %p20, %s21, %s22
      %p26 = pneg %p20
      %p27 = scmp.eq.s32.totalorder %s11, 1
      %p28 = por %p26, %p27
      %p29 = scmp.ne.s32.totalorder %s21, %s24
      %p30 = scmp.eq.s32.totalorder %s11, 0
      %p31 = por %p29, %p30
      %p32 = scmp.ne.s32.totalorder %s21, %s24
      %p33 = scmp.eq.s32.totalorder %s16, 1
      %p34 = por %p32, %p33
      %p35 = scmp.ne.s32.totalorder %s24, %s25
      %p36 = scmp.eq.s32.totalorder %s16, 0
      %p37 = por %p35, %p36
      %p38 = scmp.ne.s32.totalorder %s24, %s25
      %p39 = scmp.eq.s32.totalorder %s17, 1
      %p40 = por %p38, %p39
      %p42 = scmp.ne.s32.totalorder %s25, %s41
      %p43 = scmp.eq.s32.totalorder %s17, 0
      %p44 = por %p42, %p43
      %s46 = sadd.s32 %s45, 1
      %p49 = scmp.eq.s32.totalorder %s11, 1
      %p50 = scmp.ne.s32.totalorder %s45, %s47
      %p51 = scmp.eq.s32.totalorder %s11, 0
      %p52 = por %p50, %p51
      %p53 = scmp.ne.s32.totalorder %s45, %s47
      %p54 = scmp.eq.s32.totalorder %s16, 1
      %p55 = por %p53, %p54
      %p56 = scmp.ne.s32.totalorder %s47, %s48
      %p57 = scmp.eq.s32.totalorder %s16, 0
      %p58 = por %p56, %p57
      %p59 = scmp.ne.s32.totalorder %s47, %s48
      %p60 = scmp.eq.s32.totalorder %s17, 1
      %p61 = por %p59, %p60
      %p63 = scmp.ne.s32.totalorder %s48, %s62
      %p64 = scmp.eq.s32.totalorder %s17, 0
      %p65 = por %p63, %p64
      %s66 = ssub.s32 %s11, %s18
      %p67 = scmp.eq.s32.totalorder %s66, 0
      %s69 = sadd.s32 %s68, 1
      %s70 = scalar_select %p67, %s68, %s69
      %p73 = pneg %p67
      %p74 = scmp.eq.s32.totalorder %s11, 1
      %p75 = por %p73, %p74
      %p76 = scmp.ne.s32.totalorder %s68, %s71
      %p77 = scmp.eq.s32.totalorder %s11, 0
      %p78 = por %p76, %p77
      %p79 = scmp.ne.s32.totalorder %s68, %s71
      %p80 = scmp.eq.s32.totalorder %s16, 1
      %p81 = por %p79, %p80
      %p82 = scmp.ne.s32.totalorder %s71, %s72
      %p83 = scmp.eq.s32.totalorder %s16, 0
      %p84 = por %p82, %p83
      %p85 = scmp.ne.s32.totalorder %s71, %s72
      %p86 = scmp.eq.s32.totalorder %s17, 1
      %p87 = por %p85, %p86
      %p89 = scmp.ne.s32.totalorder %s72, %s88
      %p90 = scmp.eq.s32.totalorder %s17, 0
      %p91 = por %p89, %p90
      %p92 = scmp.le.s32.totalorder 1, %s11
      %p93 = scmp.lt.s32.totalorder %s11, 3
      %p94 = pnand %p92, %p93
      %p95 = pneg %p94
      // Predicated region
      $region9: #{tpu_custom_call.1} parent=5 // pred_check
        _
      $region10: #{tpu_custom_call.1} parent=5 // pred_check_branch
        %97 = sbr.rel (%p94) target = $region12
      $region11: #{tpu_custom_call.1} parent=5 // pred_region
        %s98 = ssub.s32 %s11, 1
        // Predicated region
        $region13: #{tpu_custom_call.1} parent=11 // pred_check
          %p99 = pneg %p58
        $region14: #{tpu_custom_call.1} parent=11 // pred_check_branch
          %101 = sbr.rel (%p99) target = $region16
        $region15: #{tpu_custom_call.1} parent=11 // pred_region
          _
        $region16: #{tpu_custom_call.1} parent=11 // pred_fallthru
          _
      $region12: #{tpu_custom_call.1} parent=5 // pred_fallthru
        _
      %p102 = scmp.lt.s32.totalorder %s11, 2
      // Predicated region
      $region17: #{tpu_custom_call.1} parent=5 // pred_check
        %p103 = pneg %p102
      $region18: #{tpu_custom_call.1} parent=5 // pred_check_branch
        %105 = sbr.rel (%p103) target = $region20
      $region19: #{tpu_custom_call.1} parent=5 // pred_region
        // Predicated region
        $region21: #{tpu_custom_call.1} parent=19 // pred_check
          %p106 = pneg %p31
        $region22: #{tpu_custom_call.1} parent=19 // pred_check_branch
          %108 = sbr.rel (%p106) target = $region24
        $region23: #{tpu_custom_call.1} parent=19 // pred_region
          %s109 = smul.u32 4, %s11
          %p110 = scmp.lt.s32.totalorder %s109, 7
          %s111 = scalar_select %p110, %s109, 7
          %s112 = smul.addr %s111, 8
          %s113 = scalar_lea.vmem %s0, %s112
          %s114 = smul.u32 4, %s11
        $region24: #{tpu_custom_call.1} parent=19 // pred_fallthru
          _
      $region20: #{tpu_custom_call.1} parent=5 // pred_fallthru
        _
      %p115 = scmp.le.s32.totalorder 1, %s11
      %p116 = scmp.lt.s32.totalorder %s11, 3
      %p117 = pnand %p115, %p116
      %p118 = pneg %p117
      // Predicated region
      $region25: #{tpu_custom_call.1} parent=5 // pred_check
        _
      $region26: #{tpu_custom_call.1} parent=5 // pred_check_branch
        %120 = sbr.rel (%p117) target = $region28
      $region27: #{tpu_custom_call.1} parent=5 // pred_region
        %s121 = ssub.s32 %s11, 1
        %s122 = smul.u32 4, %s16
        %p123 = scmp.lt.s32.totalorder %s122, 7
        %s124 = scalar_select %p123, %s122, 7
        %s125 = smul.addr %s124, 8
        %s126 = scalar_lea.vmem %s0, %s125
        %p127 = pneg %p37
        %p128 = pneg %p34
        %p129 = pneg %p58
        %p130 = pneg %p55
        %p131 = pneg %p84
        %p132 = pneg %p81
        %s133 = sand.u32 %s71, 1
        %s134 = scalar_lea.sflag [#allocation3], %s133
        %s135 = sand.u32 %s71, 1
        %s136 = smul.addr %s135, 32
        %s137 = scalar_lea.vmem [#allocation2], %s136
        %s138 = smul.u32 4, %s16
        %p139 = scmp.lt.s32.totalorder %s138, 7
        %s140 = scalar_select %p139, %s138, 7
        %s141 = smul.addr %s140, 8
        %s142 = scalar_lea.vmem %s0, %s141
        %s143 = smul.u32 4, %s16
        %s144 = smul.u32 4, %s16
        %v145 = vld [vmem:[%s142] sm:$0xff]
        %v146 = vld [vmem:[%s142 + $0x8] sm:$0xff]
        %v147 = vld [vmem:[%s142 + $0x10] sm:$0xff]
        %v148 = vld [vmem:[%s142 + $0x18] sm:$0xff]
        %v149 = vcvt.f32.s32.to.zero.pseudo %v145
        %v150 = vcvt.f32.s32.to.zero.pseudo %v146
        %v151 = vcvt.f32.s32.to.zero.pseudo %v147
        %v152 = vcvt.f32.s32.to.zero.pseudo %v148
        %v153 = vand.u32 2147483647, %v145
        %v154 = vand.u32 2147483647, %v146
        %v155 = vand.u32 2147483647, %v147
        %v156 = vand.u32 2147483647, %v148
        %vm157 = vcmp.eq.f32.partialorder %v153, inf
        %vm158 = vcmp.eq.f32.partialorder %v154, inf
        %vm159 = vcmp.eq.f32.partialorder %v155, inf
        %vm160 = vcmp.eq.f32.partialorder %v156, inf
        %v161 = vsel %vm157, 0.0, %v145
        %v162 = vsel %vm158, 0.0, %v146
        %v163 = vsel %vm159, 0.0, %v147
        %v164 = vsel %vm160, 0.0, %v148
        %v165 = vsel %vm157, 1, 0
        %v166 = vsel %vm158, 1, 0
        %v167 = vsel %vm159, 1, 0
        %v168 = vsel %vm160, 1, 0
        %v169 = vcvt.s32.f32 %v165
        %v170 = vcvt.s32.f32 %v166
        %v171 = vcvt.s32.f32 %v167
        %v172 = vcvt.s32.f32 %v168
        %v173 = vlaneseq
        %v174 = vand.u32 %v173, 127
        %175 = vset.pattern.permute.xlu0 8
        %176 = vperm.xlu0 %175, %v149
        %v177 = vpop.permute.xlu0 %176
        %178 = vset.pattern.permute.xlu0 8
        %179 = vperm.xlu0 %178, %v150
        %v180 = vpop.permute.xlu0 %179
        %181 = vset.pattern.permute.xlu0 8
        %182 = vperm.xlu0 %181, %v151
        %v183 = vpop.permute.xlu0 %182
        %184 = vset.pattern.permute.xlu0 8
        %185 = vperm.xlu0 %184, %v152
        %v186 = vpop.permute.xlu0 %185
        %vm187 = vcmp.eq.s32.totalorder %v174, %v177
        %vm188 = vcmp.eq.s32.totalorder %v174, %v180
        %vm189 = vcmp.eq.s32.totalorder %v174, %v183
        %vm190 = vcmp.eq.s32.totalorder %v174, %v186
        %v191 = vsel %vm187, 1, 0
        %v192 = vsel %vm188, 1, 0
        %v193 = vsel %vm189, 1, 0
        %v194 = vsel %vm190, 1, 0
        %v195 = vcvt.s32.f32 %v191
        %v196 = vcvt.s32.f32 %v192
        %v197 = vcvt.s32.f32 %v193
        %v198 = vcvt.s32.f32 %v194
        %199 = vset.pattern.permute.xlu0 9
        %200 = vperm.xlu0 %199, %v149
        %v201 = vpop.permute.xlu0 %200
        %202 = vset.pattern.permute.xlu0 9
        %203 = vperm.xlu0 %202, %v150
        %v204 = vpop.permute.xlu0 %203
        %205 = vset.pattern.permute.xlu0 9
        %206 = vperm.xlu0 %205, %v151
        %v207 = vpop.permute.xlu0 %206
        %208 = vset.pattern.permute.xlu0 9
        %209 = vperm.xlu0 %208, %v152
        %v210 = vpop.permute.xlu0 %209
        %vm211 = vcmp.eq.s32.totalorder %v174, %v201
        %vm212 = vcmp.eq.s32.totalorder %v174, %v204
        %vm213 = vcmp.eq.s32.totalorder %v174, %v207
        %vm214 = vcmp.eq.s32.totalorder %v174, %v210
        %v215 = vsel %vm211, 1, 0
        %v216 = vsel %vm212, 1, 0
        %v217 = vsel %vm213, 1, 0
        %v218 = vsel %vm214, 1, 0
        %v219 = vcvt.s32.f32 %v215
        %v220 = vcvt.s32.f32 %v216
        %v221 = vcvt.s32.f32 %v217
        %v222 = vcvt.s32.f32 %v218
        %v223 = vadd.f32 %v195, %v219
        %v224 = vadd.f32 %v196, %v220
        %v225 = vadd.f32 %v197, %v221
        %v226 = vadd.f32 %v198, %v222
        %227 = vset.pattern.permute.xlu0 10
        %228 = vperm.xlu0 %227, %v149
        %v229 = vpop.permute.xlu0 %228
        %230 = vset.pattern.permute.xlu0 10
        %231 = vperm.xlu0 %230, %v150
        %v232 = vpop.permute.xlu0 %231
        %233 = vset.pattern.permute.xlu0 10
        %234 = vperm.xlu0 %233, %v151
        %v235 = vpop.permute.xlu0 %234
        %236 = vset.pattern.permute.xlu0 10
        %237 = vperm.xlu0 %236, %v152
        %v238 = vpop.permute.xlu0 %237
        %vm239 = vcmp.eq.s32.totalorder %v174, %v229
        %vm240 = vcmp.eq.s32.totalorder %v174, %v232
        %vm241 = vcmp.eq.s32.totalorder %v174, %v235
        %vm242 = vcmp.eq.s32.totalorder %v174, %v238
        %v243 = vsel %vm239, 1, 0
        %v244 = vsel %vm240, 1, 0
        %v245 = vsel %vm241, 1, 0
        %v246 = vsel %vm242, 1, 0
        %v247 = vcvt.s32.f32 %v243
        %v248 = vcvt.s32.f32 %v244
        %v249 = vcvt.s32.f32 %v245
        %v250 = vcvt.s32.f32 %v246
        %v251 = vadd.f32 %v223, %v247
        %v252 = vadd.f32 %v224, %v248
        %v253 = vadd.f32 %v225, %v249
        %v254 = vadd.f32 %v226, %v250
        %255 = vset.pattern.permute.xlu0 11
        %256 = vperm.xlu0 %255, %v149
        %v257 = vpop.permute.xlu0 %256
        %258 = vset.pattern.permute.xlu0 11
        %259 = vperm.xlu0 %258, %v150
        %v260 = vpop.permute.xlu0 %259
        %261 = vset.pattern.permute.xlu0 11
        %262 = vperm.xlu0 %261, %v151
        %v263 = vpop.permute.xlu0 %262
        %264 = vset.pattern.permute.xlu0 11
        %265 = vperm.xlu0 %264, %v152
        %v266 = vpop.permute.xlu0 %265
        %vm267 = vcmp.eq.s32.totalorder %v174, %v257
        %vm268 = vcmp.eq.s32.totalorder %v174, %v260
        %vm269 = vcmp.eq.s32.totalorder %v174, %v263
        %vm270 = vcmp.eq.s32.totalorder %v174, %v266
        %v271 = vsel %vm267, 1, 0
        %v272 = vsel %vm268, 1, 0
        %v273 = vsel %vm269, 1, 0
        %v274 = vsel %vm270, 1, 0
        %v275 = vcvt.s32.f32 %v271
        %v276 = vcvt.s32.f32 %v272
        %v277 = vcvt.s32.f32 %v273
        %v278 = vcvt.s32.f32 %v274
        %v279 = vadd.f32 %v251, %v275
        %v280 = vadd.f32 %v252, %v276
        %v281 = vadd.f32 %v253, %v277
        %v282 = vadd.f32 %v254, %v278
        %287 = vrot.lane.b32.xlu0 %v169, 8
        %v288 = vpop.permute.xlu0 %287
        %289 = vrot.lane.b32.xlu0 %v170, 8
        %v290 = vpop.permute.xlu0 %289
        %291 = vrot.lane.b32.xlu0 %v171, 8
        %v292 = vpop.permute.xlu0 %291
        %293 = vrot.lane.b32.xlu0 %v172, 8
        %v294 = vpop.permute.xlu0 %293
        %303 = vrot.lane.b32.xlu0 %v279, 16
        %v304 = vpop.permute.xlu0 %303
        %305 = vrot.lane.b32.xlu0 %v280, 16
        %v306 = vpop.permute.xlu0 %305
        %307 = vrot.lane.b32.xlu0 %v281, 16
        %v308 = vpop.permute.xlu0 %307
        %309 = vrot.lane.b32.xlu0 %v282, 16
        %v310 = vpop.permute.xlu0 %309
        %vm315 = vcmask 64512
        %v316 = vsel %vm315, %v161, %v288
        %v317 = vsel %vm315, %v162, %v290
        %v318 = vsel %vm315, %v163, %v292
        %v319 = vsel %vm315, %v164, %v294
        %vm320 = vcmask 130048
        %v321 = vsel %vm320, %v316, %v304
        %v322 = vsel %vm320, %v317, %v306
        %v323 = vsel %vm320, %v318, %v308
        %v324 = vsel %vm320, %v319, %v310
        %v325 = vld [vmem:[%s1] sm:$0xff]
        %v326 = vld [vmem:[%s1 + $0x8] sm:$0xff]
        %v327 = vld [vmem:[%s1 + $0x10] sm:$0xff]
        %v328 = vld [vmem:[%s1 + $0x18] sm:$0xff]
        %v329 = vld [vmem:[%s1 + $0x20] sm:$0xff]
        %v330 = vld [vmem:[%s1 + $0x28] sm:$0xff]
        %vm331 = vcmask 392192
        %v333 = vsel %vm331, %v321, 0
        %v336 = vsel %vm331, %v322, 0
        %v339 = vsel %vm331, %v323, 0
        %v342 = vsel %vm331, %v324, 0
        %344 = vmatprep.subr.mxu0 0.0
        %345 = vmatpush1.msra.mxu0 0.0
        %346 = vmatprep.subr.mxu0 0.0
        %347 = vmatpush1.msra.mxu0 0.0
        %348 = vmatprep.subr.mxu0 0.0
        %349 = vmatpush1.msra.mxu0 0.0
        %350 = vmatprep.subr.mxu0 0.0
        %351 = vmatpush1.msra.mxu0 0.0
        %352 = vmatprep.subr.mxu0 0.0
        %353 = vmatpush1.msra.mxu0 0.0
        %354 = vmatprep.subr.mxu0 0.0
        %355 = vmatpush1.msra.mxu0 0.0
        %356 = vmatprep.subr.mxu0 0.0
        %357 = vmatpush1.msra.mxu0 0.0
        %358 = vmatprep.subr.mxu0 0.0
        %359 = vmatpush1.msra.mxu0 0.0
        %360 = vmatprep.subr.mxu0 0.0
        %361 = vmatpush1.msra.mxu0 0.0
        %362 = vmatprep.subr.mxu0 0.0
        %363 = vmatpush1.msra.mxu0 0.0
        %364 = vmatprep.subr.mxu0 0.0
        %365 = vmatpush1.msra.mxu0 %v330
        %366 = vmatprep.subr.mxu0 0.0
        %367 = vmatpush1.msra.mxu0 %v329
        %368 = vmatprep.subr.mxu0 0.0
        %369 = vmatpush1.msra.mxu0 %v328
        %370 = vmatprep.subr.mxu0 0.0
        %371 = vmatpush1.msra.mxu0 %v327
        %372 = vmatprep.subr.mxu0 0.0
        %373 = vmatpush1.msra.mxu0 %v326
        %374 = vmatprep.subr.mxu0 0.0
        %375 = vmatpush1.msra.mxu0 %v325
        %376 = vmatprep.subr.mxu0 0.0
        %377 = vmatpush2.msra.mxu0 0.0
        %378 = vmatprep.subr.mxu0 0.0
        %379 = vmatpush2.msra.mxu0 0.0
        %380 = vmatprep.subr.mxu0 0.0
        %381 = vmatpush2.msra.mxu0 0.0
        %382 = vmatprep.subr.mxu0 0.0
        %383 = vmatpush2.msra.mxu0 0.0
        %384 = vmatprep.subr.mxu0 0.0
        %385 = vmatpush2.msra.mxu0 0.0
        %386 = vmatprep.subr.mxu0 0.0
        %387 = vmatpush2.msra.mxu0 0.0
        %388 = vmatprep.subr.mxu0 0.0
        %389 = vmatpush2.msra.mxu0 0.0
        %390 = vmatprep.subr.mxu0 0.0
        %391 = vmatpush2.msra.mxu0 0.0
        %392 = vmatprep.subr.mxu0 0.0
        %393 = vmatpush2.msra.mxu0 0.0
        %394 = vmatprep.subr.mxu0 0.0
        %395 = vmatpush2.msra.mxu0 0.0
        %396 = vmatprep.subr.mxu0 0.0
        %397 = vmatpush2.msra.mxu0 0.0
        %398 = vmatprep.subr.mxu0 0.0
        %399 = vmatpush2.msra.mxu0 0.0
        %400 = vmatprep.subr.mxu0 0.0
        %401 = vmatpush2.msra.mxu0 0.0
        %402 = vmatprep.subr.mxu0 0.0
        %403 = vmatpush2.msra.mxu0 0.0
        %404 = vmatprep.subr.mxu0 0.0
        %405 = vmatpush2.msra.mxu0 0.0
        %406 = vmatprep.subr.mxu0 0.0
        %407 = vmatpush2.msra.mxu0 0.0
        %408 = vmatprep.mubr.f32.mxu0 0.0
        %409 = vmatmul.mubr.f32.gmra.mxu0 %v333
        %v410 = vpop.f32.mrf.mxu0
        %v411 = vadd.f32 0.0, %v410
        %v412 = vpop.f32.mrf.mxu0
        %413 = vmatprep.mubr.f32.mxu0 0.0
        %414 = vmatmul.mubr.f32.gmra.mxu0 %v336
        %v415 = vpop.f32.mrf.mxu0
        %v416 = vadd.f32 0.0, %v415
        %v417 = vpop.f32.mrf.mxu0
        %418 = vmatprep.mubr.f32.mxu0 0.0
        %419 = vmatmul.mubr.f32.gmra.mxu0 %v339
        %v420 = vpop.f32.mrf.mxu0
        %v421 = vadd.f32 0.0, %v420
        %v422 = vpop.f32.mrf.mxu0
        %423 = vmatprep.mubr.f32.mxu0 0.0
        %424 = vmatmul.mubr.f32.gmra.mxu0 %v342
        %v425 = vpop.f32.mrf.mxu0
        %v426 = vadd.f32 0.0, %v425
        %v427 = vpop.f32.mrf.mxu0
        %428 = vdwg.mxu0
        %429 = vst [vmem:[%s137] sm:$0xff] %v411
        %430 = vst [vmem:[%s137 + $0x8] sm:$0xff] %v416
        %431 = vst [vmem:[%s137 + $0x10] sm:$0xff] %v421
        %432 = vst [vmem:[%s137 + $0x18] sm:$0xff] %v426
        %s433 = sand.u32 %s71, 1
        %s434 = scalar_lea.sflag [#allocation3], %s433
        %s435 = sand.u32 %s71, 1
        %s436 = smul.addr %s435, 32
        %s437 = scalar_lea.vmem [#allocation2], %s436
        // Predicated region
        $region29: #{tpu_custom_call.1} parent=27 // pred_check
          %p438 = pneg %p81
        $region30: #{tpu_custom_call.1} parent=27 // pred_check_branch
          %440 = sbr.rel (%p438) target = $region32
        $region31: #{tpu_custom_call.1} parent=27 // pred_region
          %s441 = smul.u32 4, %s16
          %s443 = ssub.s32 512, 512
          %444 = vsyncadd %s434, %s443
          %s445 = smul.addr %s441, 128
          %s446 = scalar_lea.hbm %s2, %s445
          %s447 = sshll.u32 %s437, 4
          %s448 = int_to_ptr.vmem [resolvable:$true] %s447
          %453 = dma.vmem_to_hbm [thread:$0]  %s448, 512, %s446, %s434, 128, 128, 8
        $region32: #{tpu_custom_call.1} parent=27 // pred_fallthru
          _
      $region28: #{tpu_custom_call.1} parent=5 // pred_fallthru
        _
      %p454 = scmp.le.s32.totalorder 2, %s11
      // Predicated region
      $region33: #{tpu_custom_call.1} parent=5 // pred_check
        %p455 = pneg %p454
      $region34: #{tpu_custom_call.1} parent=5 // pred_check_branch
        %457 = sbr.rel (%p455) target = $region36
      $region35: #{tpu_custom_call.1} parent=5 // pred_region
        %s458 = ssub.s32 %s11, 2
        // Predicated region
        $region37: #{tpu_custom_call.1} parent=35 // pred_check
          %p459 = pneg %p87
        $region38: #{tpu_custom_call.1} parent=35 // pred_check_branch
          %461 = sbr.rel (%p459) target = $region40
        $region39: #{tpu_custom_call.1} parent=35 // pred_region
          %s462 = sand.u32 %s72, 1
          %s463 = scalar_lea.sflag [#allocation3], %s462
          %s464 = sand.u32 %s72, 1
          %s465 = smul.addr %s464, 32
          %s466 = scalar_lea.vmem [#allocation2], %s465
          %467 = dma.done %s463, 512
        $region40: #{tpu_custom_call.1} parent=35 // pred_fallthru
          _
      $region36: #{tpu_custom_call.1} parent=5 // pred_fallthru
        _
    $region6: #{tpu_custom_call.1} parent=1 // loop_footer
      %s15 = sadd.s32 1, %s11
    $region7: #{tpu_custom_call.1} parent=1 // loop_footer_branch
      %10 = sbr.rel target = $region3
    $region8: #{tpu_custom_call.1} parent=1 // loop_exit
      _
    %468 = vsyncpa [#allocation3], 1
    %s469 = scalar_lea.sflag [#allocation3], 1
    %470 = vsyncpa %s469, 1

</llo_original>
